<compile_context>
chip_gen: v5e
topology: v5e:2x2
jax: 0.10.0
libtpu: 0.0.40
codegen_flags: <defaults>
</compile_context>

<pallas_src>
import functools
from typing import NamedTuple

import jax
import jax.numpy as jnp
from jax import lax
from jax.experimental import pallas as pl
from jax.experimental.pallas import tpu as pltpu

SCALE_MIN = 1e-4
SCALE_MAX = 1.0
# softplus(x) >= SCALE_MAX for x >= log(e^SCALE_MAX - 1) ~= 0.5413, so clamping the
# pre-activation at 0.55 is exact after the clip and keeps exp() bounded.
_SOFTPLUS_SAT = 0.55

_LANE = 128
_SUBLANE = 8


def _round_up(x, m):
    return (x + m - 1) // m * m


class PackedGaussianHead(NamedTuple):
    w: jax.Array          # [D, P_total] bf16 fused loc|scale weights (zero padded)
    b: jax.Array          # [1, P_total] f32 fused biases
    action_size: int      # A
    scale_offset: int     # column where the scale head starts
    single_block: bool    # True when both heads fit one 128-lane block


def pack_gaussian_head_params(w_loc, b_loc, w_scale, b_scale):
    """Pack both linear heads once (at init time) into one lane-dense weight."""
    D, A = w_loc.shape
    single = (2 * A) <= _LANE
    if single:
        p_total = _LANE
        scale_off = A
    else:
        p = _round_up(A, _LANE)
        p_total = 2 * p
        scale_off = p
    w = jnp.zeros((D, p_total), jnp.float32)
    w = w.at[:, :A].set(w_loc.astype(jnp.float32))
    w = w.at[:, scale_off:scale_off + A].set(w_scale.astype(jnp.float32))
    b = jnp.zeros((1, p_total), jnp.float32)
    b = b.at[:, :A].set(b_loc.astype(jnp.float32))
    b = b.at[:, scale_off:scale_off + A].set(b_scale.astype(jnp.float32))
    return PackedGaussianHead(w.astype(jnp.bfloat16), b, A, scale_off, single)


def _gaussian_head_kernel(x_ref, w_ref, b_ref, out_ref, *, a, scale_off, single):
    # One fused matmul for both heads: bf16 MXU inputs, f32 accumulation.
    y = jnp.dot(x_ref[...].astype(jnp.bfloat16), w_ref[...],
                preferred_element_type=jnp.float32)
    y = y + b_ref[...]                                     # [TB, P] + [1, P]

    if single:
        # Both heads share one 128-lane block; blend with a lane mask and do a
        # single unmasked lane-dense store.
        loc = jnp.tanh(y)
        s = jnp.minimum(y, jnp.float32(_SOFTPLUS_SAT))
        scale = jnp.clip(jnp.log1p(jnp.exp(s)), SCALE_MIN, SCALE_MAX)
        col = lax.broadcasted_iota(jnp.int32, y.shape, dimension=1)
        out_ref[...] = jnp.where(col < a, loc, scale).astype(out_ref.dtype)
    else:
        # Two lane-aligned halves (scale_off is a multiple of 128).
        out_ref[:, :scale_off] = jnp.tanh(y[:, :scale_off]).astype(out_ref.dtype)
        s = jnp.minimum(y[:, scale_off:], jnp.float32(_SOFTPLUS_SAT))
        scale = jnp.clip(jnp.log1p(jnp.exp(s)), SCALE_MIN, SCALE_MAX)
        out_ref[:, scale_off:] = scale.astype(out_ref.dtype)


def gaussian_policy_head_packed(x, packed, *, block_b=1024):
    """x: [B, D]; packed: PackedGaussianHead.  Returns (loc [B, A], scale [B, A])."""
    B, D = x.shape
    p_total = packed.w.shape[1]
    A = packed.action_size

    def _vmem_need(tb):
        return (2 * tb * D * x.dtype.itemsize                # x tile (double-buffered)
                + 2 * D * p_total * packed.w.dtype.itemsize  # resident fused weight
                + 2 * tb * p_total * 4                       # f32 output tile
                + 2 * _SUBLANE * p_total * 4)                # bias buffers

    # --- batch tile selection ---
    if B <= _SUBLANE:
        TB = B                                   # block == full dim: always legal
    else:
        TB = min(block_b, _round_up(B, _SUBLANE))
        if B >= 2 * _SUBLANE:
            # Guarantee >=2 grid steps so "parallel" shards across both v7x TCs.
            TB = min(TB, _round_up(pl.cdiv(B, 2), _SUBLANE))
        # Cap TB so double-buffered tiles fit comfortably in v7x's 64 MiB VMEM.
        budget = 32 * 1024 * 1024
        while TB > _SUBLANE and _vmem_need(TB) > budget:
            TB = _round_up(TB // 2, _SUBLANE)

    grid_n = pl.cdiv(B, TB)
    if grid_n == 1:
        TB = B  # exact full-dim block: no overhang for single-step grids

    vmem_limit = int(min(max(2 * _vmem_need(TB), 16 << 20), 48 << 20))

    out = pl.pallas_call(
        functools.partial(_gaussian_head_kernel, a=A,
                          scale_off=packed.scale_offset,
                          single=packed.single_block),
        out_shape=jax.ShapeDtypeStruct((B, p_total), jnp.float32),
        grid=(grid_n,),
        in_specs=[
            pl.BlockSpec((TB, D), lambda i: (i, 0)),          # x: tiled over batch
            pl.BlockSpec((D, p_total), lambda i: (0, 0)),     # fused W: resident
            pl.BlockSpec((1, p_total), lambda i: (0, 0)),     # fused bias: resident
        ],
        out_specs=pl.BlockSpec((TB, p_total), lambda i: (i, 0)),
        compiler_params=pltpu.CompilerParams(
            dimension_semantics=("parallel",),
            vmem_limit_bytes=vmem_limit),
    )(x, packed.w, packed.b)

    loc = out[:, :A]
    scale = out[:, packed.scale_offset:packed.scale_offset + A]
    return loc, scale


def gaussian_policy_head(x, w_loc, b_loc, w_scale, b_scale, *, block_b=1024):
    """Convenience wrapper (packs per call).  Prefer packing once at init."""
    packed = pack_gaussian_head_params(w_loc, b_loc, w_scale, b_scale)
    return gaussian_policy_head_packed(x, packed, block_b=block_b)


if __name__ == "__main__":
    key = jax.random.PRNGKey(0)
    B, D, A = 8, 32, 8  # batch, input_size, action_size

    kx, kwl, kbl, kws, kbs = jax.random.split(key, 5)
    # Deterministic PyTorch-Linear-style init: U(-1/sqrt(D), 1/sqrt(D)).
    bound = 1.0 / (D ** 0.5)
    x = jax.random.normal(kx, (B, D), dtype=jnp.float32)
    w_loc = jax.random.uniform(kwl, (D, A), jnp.float32, -bound, bound)
    b_loc = jax.random.uniform(kbl, (A,), jnp.float32, -bound, bound)
    w_scale = jax.random.uniform(kws, (D, A), jnp.float32, -bound, bound)
    b_scale = jax.random.uniform(kbs, (A,), jnp.float32, -bound, bound)

    packed = pack_gaussian_head_params(w_loc, b_loc, w_scale, b_scale)  # once, at init
    loc, scale = gaussian_policy_head_packed(x, packed)
    jax.block_until_ready((loc, scale))
    assert loc.shape == (B, A) and scale.shape == (B, A)

    # Reference with the same bf16 matmul inputs / f32 accumulation as the kernel.
    xb = x.astype(jnp.bfloat16).astype(jnp.float32)
    wl = w_loc.astype(jnp.bfloat16).astype(jnp.float32)
    ws = w_scale.astype(jnp.bfloat16).astype(jnp.float32)
    loc_ref = jnp.tanh(xb @ wl + b_loc)
    scale_ref = jnp.clip(jax.nn.softplus(xb @ ws + b_scale), SCALE_MIN, SCALE_MAX)
    assert jnp.allclose(loc, loc_ref, atol=2e-3)
    assert jnp.allclose(scale, scale_ref, atol=2e-3)

    # Loose check against the full-f32 reference (bf16 weight rounding only).
    loc_f32 = jnp.tanh(x @ w_loc + b_loc)
    scale_f32 = jnp.clip(jax.nn.softplus(x @ w_scale + b_scale), SCALE_MIN, SCALE_MAX)
    assert jnp.allclose(loc, loc_f32, atol=2e-2)
    assert jnp.allclose(scale, scale_f32, atol=2e-2)

    # TODO(synk): constructing the Normal(loc, scale) distribution object has no
    # Pallas equivalent; the kernel returns its parameters (loc, scale).
    print("KERNEL_OK")
</pallas_src>

<mosaic_0001>
module attributes {stable_mosaic.version = 11 : i64} {
  func.func @_gaussian_head_kernel(%arg0: i32, %arg1: memref<8x32xf32, #tpu.memory_space<vmem>>, %arg2: memref<32x128xbf16, #tpu.memory_space<vmem>>, %arg3: memref<1x128xf32, #tpu.memory_space<vmem>>, %arg4: memref<8x128xf32, #tpu.memory_space<vmem>>) attributes {dimension_semantics = [#tpu.dimension_semantics<parallel>], iteration_bounds = array<i64: 1>, scalar_prefetch = 0 : i64, scratch_operands = 0 : i64, tpu.core_type = #tpu.core_type<tc>, window_params = [{transform_indices = @transform_0, window_bounds = array<i64: 8, 32>}, {pipeline_mode = #tpu.pipeline_mode<synchronous>, transform_indices = @transform_1, window_bounds = array<i64: 32, 128>}, {pipeline_mode = #tpu.pipeline_mode<synchronous>, transform_indices = @transform_2, window_bounds = array<i64: 1, 128>}, {transform_indices = @transform_3, window_bounds = array<i64: 8, 128>}]} {
    %c0 = arith.constant 0 : index
    %c0_0 = arith.constant 0 : index
    %0 = vector.load %arg1[%c0, %c0_0] : memref<8x32xf32, #tpu.memory_space<vmem>>, vector<8x32xf32>
    %1 = arith.truncf %0 : vector<8x32xf32> to vector<8x32xbf16>
    %c0_1 = arith.constant 0 : index
    %c0_2 = arith.constant 0 : index
    %2 = vector.load %arg2[%c0_1, %c0_2] : memref<32x128xbf16, #tpu.memory_space<vmem>>, vector<32x128xbf16>
    %cst = arith.constant dense<0.000000e+00> : vector<8x128xf32>
    %3 = tpu.matmul %1, %2, %cst {dimension_numbers = #tpu.dot_dimension_numbers<[1], [0], [0], [1], [0, 0, 1, 1], [], []>} : vector<8x32xbf16>, vector<32x128xbf16>, vector<8x128xf32> -> vector<8x128xf32>
    %c0_3 = arith.constant 0 : index
    %c0_4 = arith.constant 0 : index
    %4 = vector.load %arg3[%c0_3, %c0_4] : memref<1x128xf32, #tpu.memory_space<vmem>>, vector<1x128xf32>
    %5 = vector.broadcast %4 : vector<1x128xf32> to vector<8x128xf32>
    %6 = arith.addf %3, %5 : vector<8x128xf32>
    %7 = math.tanh %6 : vector<8x128xf32>
    %cst_5 = arith.constant 5.500000e-01 : f32
    %8 = vector.broadcast %cst_5 : f32 to vector<8x128xf32>
    %9 = arith.minimumf %6, %8 : vector<8x128xf32>
    %10 = math.exp %9 : vector<8x128xf32>
    %11 = math.log1p %10 : vector<8x128xf32>
    %cst_6 = arith.constant 9.99999974E-5 : f32
    %cst_7 = arith.constant 1.000000e+00 : f32
    %12 = vector.broadcast %cst_6 : f32 to vector<8x128xf32>
    %13 = arith.maximumf %12, %11 : vector<8x128xf32>
    %14 = vector.broadcast %cst_7 : f32 to vector<8x128xf32>
    %15 = arith.minimumf %14, %13 : vector<8x128xf32>
    %16 = tpu.iota {dimensions = array<i32: 1>} : vector<8x128xi32>
    %c8_i32 = arith.constant 8 : i32
    %17 = vector.broadcast %c8_i32 : i32 to vector<8x128xi32>
    %18 = arith.cmpi slt, %16, %17 : vector<8x128xi32>
    %19 = arith.select %18, %7, %15 : vector<8x128xi1>, vector<8x128xf32>
    %c0_8 = arith.constant 0 : index
    %c0_9 = arith.constant 0 : index
    %20 = vector.load %arg4[%c0_8, %c0_9] : memref<8x128xf32, #tpu.memory_space<vmem>>, vector<8x128xf32>
    tpu.vector_store %arg4[%c0_8, %c0_9], %19 {strides = array<i32>} : memref<8x128xf32, #tpu.memory_space<vmem>>, vector<8x128xf32>,
    return
  }
  func.func @transform_0(%arg0: i32) -> (i32, i32) {
    %c0_i32 = arith.constant 0 : i32
    %c0_i32_0 = arith.constant 0 : i32
    return %arg0, %c0_i32 : i32, i32
  }
  func.func @transform_1(%arg0: i32) -> (i32, i32) {
    %c0_i32 = arith.constant 0 : i32
    %c0_i32_0 = arith.constant 0 : i32
    %c0_i32_1 = arith.constant 0 : i32
    return %c0_i32, %c0_i32_0 : i32, i32
  }
  func.func @transform_2(%arg0: i32) -> (i32, i32) {
    %c0_i32 = arith.constant 0 : i32
    %c0_i32_0 = arith.constant 0 : i32
    %c0_i32_1 = arith.constant 0 : i32
    return %c0_i32, %c0_i32_0 : i32, i32
  }
  func.func @transform_3(%arg0: i32) -> (i32, i32) {
    %c0_i32 = arith.constant 0 : i32
    %c0_i32_0 = arith.constant 0 : i32
    return %arg0, %c0_i32 : i32, i32
  }
}

</mosaic_0001>

<llo_original>
// kernel: tpu_custom_call.1
$region0: #{tpu_custom_call.1}
  #allocation0 [shape = 'u32[]', space=smem, size = 0x4, offset = 0x4, fixed_abs, tag = 'smem constant byte address 0x4 - core index']
  #allocation1 [shape = 'u32[72,128]{1,0:T(1,128)}', space=vmem, size = 0x9000, scoped, tag = 'internal scratch']
  %s0 = inlined_call_operand.hbm [shape: f32[8,32], index: 0, kind: input, shape index: {}]
  %s1 = inlined_call_operand.hbm [shape: bf16[32,128], index: 1, kind: input, shape index: {}]
  %s2 = inlined_call_operand.vmem [shape: f32[1,128], index: 2, kind: input, shape index: {}]
  %s3 = inlined_call_operand.hbm [shape: f32[8,128], index: 3, kind: output, shape index: {}]
  %s4 = sld [smem:[#allocation0]]
  $region30: #{tpu_custom_call.1} parent=0
    _
  %s6 = ssub.s32 1, %s4
  %s7 = scalar_select 0, %s6, %s4
  $region1: #{tpu_custom_call.1} parent=0
    #allocation2 [shape = 'u8[4096]{0}', space=vmem, size = 0x1000, scoped, tag = 'input window, operand 0, single buffered']
    #allocation3 [shape = 's32[1]{0}', space=sflag, size = 0x4, scoped, tag = 'scoped memory for tpu_custom_call.1']
    #allocation4 [shape = 's32[1]{0}', space=sflag, size = 0x4, scoped, tag = 'scoped memory for tpu_custom_call.1']
    #allocation5 [shape = 'u8[8192]{0}', space=vmem, size = 0x2000, scoped, tag = 'input window, operand 1, single buffered']
    #allocation6 [shape = 's32[1]{0}', space=sflag, size = 0x4, scoped, tag = 'scoped memory for tpu_custom_call.1']
    #allocation7 [shape = 'u8[4096]{0}', space=vmem, size = 0x1000, scoped, tag = 'output window, operand 0, single buffered']
    %8 = vsyncpa [#allocation3], 0
    %9 = vsyncpa [#allocation6], 0
    %10 = vsyncpa [#allocation4], 0
    // Predicated region
    $region2: #{tpu_custom_call.1} parent=1 // pred_check
      _
    $region3: #{tpu_custom_call.1} parent=1 // pred_check_branch
      %12 = sbr.rel (0) target = $region5
    $region4: #{tpu_custom_call.1} parent=1 // pred_region
      %14 = vsyncadd [#allocation3], 0
      %s16 = sshll.u32 %s0, 4
      %s17 = int_to_ptr.hbm [resolvable:$true] %s16
      %s18 = sshll.u32 [#allocation2], 4
      %s19 = int_to_ptr.vmem [resolvable:$true] %s18
      %21 = dma.hbm_to_vmem [thread:$0]  %s17, 128, %s19, [#allocation3]
    $region5: #{tpu_custom_call.1} parent=1 // pred_fallthru
      _
    // Predicated region
    $region6: #{tpu_custom_call.1} parent=1 // pred_check
      _
    $region7: #{tpu_custom_call.1} parent=1 // pred_check_branch
      %23 = sbr.rel (0) target = $region9
    $region8: #{tpu_custom_call.1} parent=1 // pred_region
      %25 = vsyncadd [#allocation6], 0
      %s26 = sshll.u32 %s1, 4
      %s27 = int_to_ptr.hbm [resolvable:$true] %s26
      %s28 = sshll.u32 [#allocation5], 4
      %s29 = int_to_ptr.vmem [resolvable:$true] %s28
      %34 = dma.hbm_to_vmem [thread:$0]  %s27, 256, %s29, [#allocation6], 64, 64, 4
    $region9: #{tpu_custom_call.1} parent=1 // pred_fallthru
      _
    // Predicated region
    $region10: #{tpu_custom_call.1} parent=1 // pred_check
      _
    $region11: #{tpu_custom_call.1} parent=1 // pred_check_branch
      %36 = sbr.rel (0) target = $region13
    $region12: #{tpu_custom_call.1} parent=1 // pred_region
      _
    $region13: #{tpu_custom_call.1} parent=1 // pred_fallthru
      _
    // Predicated region
    $region14: #{tpu_custom_call.1} parent=1 // pred_check
      _
    $region15: #{tpu_custom_call.1} parent=1 // pred_check_branch
      %38 = sbr.rel (0) target = $region17
    $region16: #{tpu_custom_call.1} parent=1 // pred_region
      %40 = dma.done [#allocation3], 128
    $region17: #{tpu_custom_call.1} parent=1 // pred_fallthru
      _
    // Predicated region
    $region18: #{tpu_custom_call.1} parent=1 // pred_check
      _
    $region19: #{tpu_custom_call.1} parent=1 // pred_check_branch
      %42 = sbr.rel (0) target = $region21
    $region20: #{tpu_custom_call.1} parent=1 // pred_region
      %44 = dma.done [#allocation6], 256
    $region21: #{tpu_custom_call.1} parent=1 // pred_fallthru
      _
    %v46 = vld [vmem:[#allocation2] sm:$0xff]
    %v47 = vpack.c.bf16 %v46, %v46
    %v48 = vld [vmem:[#allocation5] sm:$0xf]
    %v49 = vld [vmem:[#allocation5 + $0x4] sm:$0xf]
    %v50 = vld [vmem:[#allocation5 + $0x8] sm:$0xf]
    %v51 = vld [vmem:[#allocation5 + $0xc] sm:$0xf]
    %v52 = vld [vmem:[%s2] sm:$0x1]
    %v54 = vperm.slane %v52, 0
    %v60 = vunpack.c.l.b16 %v48
    %v61 = vunpack.c.l.b16 %v49
    %v62 = vunpack.c.l.b16 %v50
    %v63 = vunpack.c.l.b16 %v51
    %v64 = vpack.c.b16 %v61, %v60
    %v65 = vpack.c.b16 %v63, %v62
    %vm68 = vcmask 261120
    %v70 = vsel %vm68, %v47, 0
    %72 = vmatpush.bf16.msra.mxu0 0
    %73 = vmatpush.bf16.msra.mxu0 0
    %74 = vmatpush.bf16.msra.mxu0 0
    %75 = vmatpush.bf16.msra.mxu0 0
    %76 = vmatpush.bf16.msra.mxu0 0
    %77 = vmatpush.bf16.msra.mxu0 0
    %78 = vmatpush.bf16.msra.mxu0 %v65
    %79 = vmatpush.bf16.msra.mxu0 %v64
    %80 = vmatmul.bf16.gmra.mxu0 %v70
    %v81 = vpop.f32.mrf.mxu0
    %v82 = vadd.f32 %v54, %v81
    %v83 = vpop.f32.mrf.mxu0
    %84 = vdwg.mxu0
    %v85 = vtanh.pop %v82
    %v86 = vmin.f32 %v82, 0.55
    %v87 = vmul.f32 %v86, 1.442695
    %v88 = vpow.pop %v87
    %v89 = vadd.f32 %v88, 1.0
    %v90 = vlog2.pop %v89
    %v91 = vmul.f32 %v90, 0.6931472
    %v92 = vmul.f32 -0.5, %v88
    %v93 = vadd.f32 %v92, 1.0
    %v94 = vmul.f32 %v93, %v88
    %v95 = vand.u32 2147483647, %v88
    %vm96 = vcmp.lt.f32.partialorder %v95, 0.0004427343
    %v97 = vsel %vm96, %v94, %v91
    %v98 = vmax.f32 %v97, 0.0001
    %v99 = vmin.f32 %v98, 1.0
    %v100 = vlaneseq
    %v101 = vand.u32 %v100, 127
    %vm102 = vcmp.lt.s32.totalorder %v101, 8
    %v103 = vsel %vm102, %v85, %v99
    %104 = vst [vmem:[#allocation7] sm:$0xff] %v103
    // Predicated region
    $region22: #{tpu_custom_call.1} parent=1 // pred_check
      _
    $region23: #{tpu_custom_call.1} parent=1 // pred_check_branch
      %106 = sbr.rel (0) target = $region25
    $region24: #{tpu_custom_call.1} parent=1 // pred_region
      %108 = vsyncadd [#allocation4], 0
      %s110 = sshll.u32 [#allocation7], 4
      %s111 = int_to_ptr.vmem [resolvable:$true] %s110
      %s112 = sshll.u32 %s3, 4
      %s113 = int_to_ptr.hbm [resolvable:$true] %s112
      %115 = dma.vmem_to_hbm [thread:$0]  %s111, 128, %s113, [#allocation4]
    $region25: #{tpu_custom_call.1} parent=1 // pred_fallthru
      _
    // Predicated region
    $region26: #{tpu_custom_call.1} parent=1 // pred_check
      _
    $region27: #{tpu_custom_call.1} parent=1 // pred_check_branch
      %117 = sbr.rel (0) target = $region29
    $region28: #{tpu_custom_call.1} parent=1 // pred_region
      %119 = dma.done [#allocation4], 128
    $region29: #{tpu_custom_call.1} parent=1 // pred_fallthru
      _
    %120 = vsyncpa [#allocation3], 1
    %121 = vsyncpa [#allocation6], 1
    %122 = vsyncpa [#allocation4], 1

</llo_original>
